<compile_context>
chip_gen: v6e
topology: v6e:2x2x1
jax: 0.10.0
libtpu: 0.0.40
codegen_flags: <defaults>
</compile_context>

<pallas_src>
import math

import jax
import jax.numpy as jnp
from jax.experimental import pallas as pl
from jax.experimental.pallas import tpu as pltpu

MXU_DTYPE = jnp.bfloat16   # MXU input dtype (accumulation is always f32)
NEG_INF = -1e9             # matches torch's masked_fill(-1000000000.0)


# ----------------------------------------------------------------------------
# Fused kernel: one batch element per grid step
# ----------------------------------------------------------------------------
def _relation_attention_kernel(p_ref, x_ref, mask_ref,
                               wv_ref, bv_ref, sw_ref, const_ref,
                               o_ref):
    """Fused RelationAttention forward for one batch element.

    p_ref    : (1, C, H) f32   queries ("p" in the module)
    x_ref    : (1, L, H) f32   keys / values ("x")
    mask_ref : (1, 1, L) f32   1.0 = attend, 0.0 = mask out
    wv_ref   : (H, H)   bf16   value weight, pre-transposed to (in, out)
    bv_ref   : (1, H)   f32    value bias
    sw_ref   : (H, 4)   bf16   packed narrow projections:
                               col0 = Wq^T @ ws_q   (score, query side)
                               col1 = Wk^T @ ws_k   (score, key side)
                               col2 = Wg[0, :H]     (gate, `out` side)
                               col3 = Wg[0, H:]     (gate, `p` side)
    const_ref: (1, 2)   f32    [score_const, gate_bias]
    o_ref    : (1, C, H) f32   gated output
    """
    p = p_ref[0]                                   # (C, H) f32
    x = x_ref[0]                                   # (L, H) f32
    msk = mask_ref[0]                              # (1, L) f32

    p_bf = p.astype(MXU_DTYPE)
    x_bf = x.astype(MXU_DTYPE)
    sw = sw_ref[...]                               # (H, 4) bf16
    consts = const_ref[...]                        # (1, 2) f32
    score_const = consts[0:1, 0:1]                 # (1, 1)
    gate_bias = consts[0:1, 1:2]                   # (1, 1)

    # value projection: v = x @ Wv^T + bv                          (L, H)
    v = jnp.dot(x_bf, wv_ref[...],
                preferred_element_type=jnp.float32) + bv_ref[...]

    # folded narrow projections (score + gate) — one lane-dense matmul each
    p_proj = jnp.dot(p_bf, sw, preferred_element_type=jnp.float32)   # (C, 4)
    x_proj = jnp.dot(x_bf, sw, preferred_element_type=jnp.float32)   # (L, 4)

    # additive score: score[c, l] = query(p_c).ws_q + key(x_l).ws_k + biases
    sq = p_proj[:, 0:1] + score_const              # (C, 1)
    sk = x_proj[:, 1:2]                            # (L, 1)
    # Broadcast sk across rows with a rank-1 contraction so L lands on the
    # lane axis (same contract-last-dims pattern as the flash kernel; no
    # in-kernel transpose / relayout needed).
    score = sq + jnp.einsum('ck,lk->cl', jnp.ones_like(sq), sk,
                            preferred_element_type=jnp.float32)      # (C, L)
    score = jnp.where(msk > 0.5, score, NEG_INF)

    # softmax over L (lane axis); normalization via the EUP reciprocal slot
    m = jnp.max(score, axis=-1, keepdims=True)
    e = jnp.exp(score - m)
    attn = e * pl.reciprocal(jnp.sum(e, axis=-1, keepdims=True), approx=True)

    # context + residual:  out = attn @ v + p                        (C, H)
    out = jnp.dot(attn.astype(MXU_DTYPE), v.astype(MXU_DTYPE),
                  preferred_element_type=jnp.float32) + p

    # gate: g = sigmoid(out . Wg_out + p . Wg_p + bg)                (C, 1)
    o_proj = jnp.dot(out.astype(MXU_DTYPE), sw,
                     preferred_element_type=jnp.float32)
    g = jax.nn.sigmoid(o_proj[:, 2:3] + p_proj[:, 3:4] + gate_bias)

    o_ref[0] = g * out + (1.0 - g) * p


# ----------------------------------------------------------------------------
# One-time parameter packing (done outside the kernel, once per model)
# ----------------------------------------------------------------------------
def pack_params(rp):
    """Fold q/k Linears into the 1-wide score head (exact algebra), pre-
    transpose the value weight, pack the four H-vector projections lane-dense,
    and fold all scalar biases into two constants."""
    H = rp["q_W"].shape[0]
    ws_q = rp["score_W"][0, :H]
    ws_k = rp["score_W"][0, H:]
    a_vec = rp["q_W"].T @ ws_q                    # (H,): p . a_vec = query(p).ws_q - const
    b_vec = rp["k_W"].T @ ws_k                    # (H,)
    wg_out = rp["gate_W"][0, :H]
    wg_p = rp["gate_W"][0, H:]
    small_w = jnp.stack([a_vec, b_vec, wg_out, wg_p], axis=1).astype(MXU_DTYPE)  # (H, 4)

    score_const = rp["q_b"] @ ws_q + rp["k_b"] @ ws_k + rp["score_b"][0]
    consts = jnp.stack([score_const, rp["gate_b"][0]]).reshape(1, 2).astype(jnp.float32)

    return dict(
        wv_t=rp["v_W"].T.astype(MXU_DTYPE),               # (H, H)
        bv=rp["v_b"].reshape(1, H).astype(jnp.float32),   # (1, H)
        small_w=small_w,                                  # (H, 4)
        consts=consts,                                    # (1, 2)
    )


# ----------------------------------------------------------------------------
# Wrapper
# ----------------------------------------------------------------------------
def relation_attention(packed, p, x, mask=None):
    """RelationAttention.forward.  p: (B, C, H), x: (B, L, H),
    mask: optional (B, L) with 1 = attend (matches the PyTorch module)."""
    B, C, H = p.shape
    L = x.shape[1]
    if mask is None:
        mask3 = jnp.ones((B, 1, L), jnp.float32)
    else:
        mask3 = mask.reshape(B, 1, L).astype(jnp.float32)

    return pl.pallas_call(
        _relation_attention_kernel,
        out_shape=jax.ShapeDtypeStruct((B, C, H), jnp.float32),
        grid=(B,),
        in_specs=[
            pl.BlockSpec((1, C, H), lambda b: (b, 0, 0)),   # p
            pl.BlockSpec((1, L, H), lambda b: (b, 0, 0)),   # x
            pl.BlockSpec((1, 1, L), lambda b: (b, 0, 0)),   # mask
            pl.BlockSpec((H, H), lambda b: (0, 0)),         # Wv^T (bf16)
            pl.BlockSpec((1, H), lambda b: (0, 0)),         # bv
            pl.BlockSpec((H, 4), lambda b: (0, 0)),         # packed narrow weights
            pl.BlockSpec((1, 2), lambda b: (0, 0)),         # folded scalar biases
        ],
        out_specs=pl.BlockSpec((1, C, H), lambda b: (b, 0, 0)),
        compiler_params=pltpu.CompilerParams(
            dimension_semantics=("parallel",)),             # v7x: shard batch over 2 TCs
    )(p.astype(jnp.float32), x.astype(jnp.float32), mask3,
      packed["wv_t"], packed["bv"], packed["small_w"], packed["consts"])


# ----------------------------------------------------------------------------
# Literal pure-JAX reference (mirrors the PyTorch forward, for verification)
# ----------------------------------------------------------------------------
def relation_attention_ref(rp, p, x, mask=None):
    q = p @ rp["q_W"].T + rp["q_b"]
    k = x @ rp["k_W"].T + rp["k_b"]
    B, C, H = q.shape
    L = k.shape[1]
    qe = jnp.broadcast_to(q[:, :, None, :], (B, C, L, H))
    ke = jnp.broadcast_to(k[:, None, :, :], (B, C, L, H))
    score = (jnp.concatenate([qe, ke], axis=3) @ rp["score_W"].T
             + rp["score_b"])[..., 0]                        # (B, C, L)
    if mask is not None:
        inv = 1.0 - jnp.broadcast_to(mask[:, None, :], score.shape)
        score = jnp.where(inv == 1.0, NEG_INF, score)
    score = jax.nn.softmax(score, axis=2)
    v = x @ rp["v_W"].T + rp["v_b"]
    out = jnp.einsum('bcl,bld->bcd', score, v) + p
    g = jax.nn.sigmoid(jnp.concatenate([out, p], axis=2) @ rp["gate_W"].T
                       + rp["gate_b"])
    return g * out + (1.0 - g) * p


# ----------------------------------------------------------------------------
# Deterministic parameter init (PyTorch nn.Linear default: U(-1/sqrt(in), ...))
# ----------------------------------------------------------------------------
def _linear_init(key, out_dim, in_dim):
    s = 1.0 / math.sqrt(in_dim)
    kw, kb = jax.random.split(key)
    W = jax.random.uniform(kw, (out_dim, in_dim), jnp.float32, minval=-s, maxval=s)
    b = jax.random.uniform(kb, (out_dim,), jnp.float32, minval=-s, maxval=s)
    return W, b


def init_relation_attention(key, hidden_size):
    ks = jax.random.split(key, 5)
    p = {}
    p["q_W"], p["q_b"] = _linear_init(ks[0], hidden_size, hidden_size)
    p["k_W"], p["k_b"] = _linear_init(ks[1], hidden_size, hidden_size)
    p["v_W"], p["v_b"] = _linear_init(ks[2], hidden_size, hidden_size)
    p["score_W"], p["score_b"] = _linear_init(ks[3], 1, 2 * hidden_size)
    p["gate_W"], p["gate_b"] = _linear_init(ks[4], 1, 2 * hidden_size)
    return p


# ----------------------------------------------------------------------------
if __name__ == "__main__":
    H, B, C, L = 32, 2, 4, 8
    key = jax.random.PRNGKey(0)
    kw, kp, kx, km = jax.random.split(key, 4)

    raw = init_relation_attention(kw, H)
    packed = pack_params(raw)

    p = 0.5 * jax.random.normal(kp, (B, C, H), jnp.float32)
    x = 0.5 * jax.random.normal(kx, (B, L, H), jnp.float32)
    mask = jax.random.bernoulli(km, 0.6, (B, L)).astype(jnp.float32)
    mask = mask.at[:, 0].set(1.0)    # every query attends to at least one key

    fwd = jax.jit(relation_attention)

    # unmasked path (equivalent to mask=None in the PyTorch forward)
    out_a = fwd(packed, p, x, jnp.ones((B, L), jnp.float32))
    jax.block_until_ready(out_a)
    ref_a = relation_attention_ref(raw, p, x, None)

    # masked path
    out_b = fwd(packed, p, x, mask)
    jax.block_until_ready(out_b)
    ref_b = relation_attention_ref(raw, p, x, mask)

    assert out_a.shape == (B, C, H), out_a.shape
    assert bool(jnp.all(jnp.isfinite(out_a))) and bool(jnp.all(jnp.isfinite(out_b)))
    assert bool(jnp.allclose(out_a, ref_a, atol=2e-2, rtol=2e-2)), \
        float(jnp.max(jnp.abs(out_a - ref_a)))
    assert bool(jnp.allclose(out_b, ref_b, atol=2e-2, rtol=2e-2)), \
        float(jnp.max(jnp.abs(out_b - ref_b)))
    print("KERNEL_OK")
</pallas_src>

<mosaic_0001>
module attributes {stable_mosaic.version = 11 : i64} {
  func.func @_relation_attention_kernel(%arg0: i32, %arg1: memref<1x4x32xf32, #tpu.memory_space<vmem>>, %arg2: memref<1x8x32xf32, #tpu.memory_space<vmem>>, %arg3: memref<1x1x8xf32, #tpu.memory_space<vmem>>, %arg4: memref<32x32xbf16, #tpu.memory_space<vmem>>, %arg5: memref<1x32xf32, #tpu.memory_space<vmem>>, %arg6: memref<32x4xbf16, #tpu.memory_space<vmem>>, %arg7: memref<1x2xf32, #tpu.memory_space<vmem>>, %arg8: memref<1x4x32xf32, #tpu.memory_space<vmem>>) attributes {dimension_semantics = [#tpu.dimension_semantics<parallel>], iteration_bounds = array<i64: 2>, scalar_prefetch = 0 : i64, scratch_operands = 0 : i64, tpu.core_type = #tpu.core_type<tc>, window_params = [{transform_indices = @transform_0, window_bounds = array<i64: 1, 4, 32>}, {transform_indices = @transform_1, window_bounds = array<i64: 1, 8, 32>}, {transform_indices = @transform_2, window_bounds = array<i64: 1, 1, 8>}, {pipeline_mode = #tpu.pipeline_mode<synchronous>, transform_indices = @transform_3, window_bounds = array<i64: 32, 32>}, {pipeline_mode = #tpu.pipeline_mode<synchronous>, transform_indices = @transform_4, window_bounds = array<i64: 1, 32>}, {pipeline_mode = #tpu.pipeline_mode<synchronous>, transform_indices = @transform_5, window_bounds = array<i64: 32, 4>}, {pipeline_mode = #tpu.pipeline_mode<synchronous>, transform_indices = @transform_6, window_bounds = array<i64: 1, 2>}, {transform_indices = @transform_7, window_bounds = array<i64: 1, 4, 32>}]} {
    %c0 = arith.constant 0 : index
    %c0_0 = arith.constant 0 : index
    %c0_1 = arith.constant 0 : index
    %0 = vector.load %arg1[%c0, %c0_0, %c0_1] : memref<1x4x32xf32, #tpu.memory_space<vmem>>, vector<1x4x32xf32>
    %1 = vector.shape_cast %0 : vector<1x4x32xf32> to vector<4x32xf32>
    %c0_2 = arith.constant 0 : index
    %c0_3 = arith.constant 0 : index
    %c0_4 = arith.constant 0 : index
    %2 = vector.load %arg2[%c0_2, %c0_3, %c0_4] : memref<1x8x32xf32, #tpu.memory_space<vmem>>, vector<1x8x32xf32>
    %3 = vector.shape_cast %2 : vector<1x8x32xf32> to vector<8x32xf32>
    %c0_5 = arith.constant 0 : index
    %c0_6 = arith.constant 0 : index
    %c0_7 = arith.constant 0 : index
    %4 = vector.load %arg3[%c0_5, %c0_6, %c0_7] : memref<1x1x8xf32, #tpu.memory_space<vmem>>, vector<1x1x8xf32>
    %5 = vector.shape_cast %4 : vector<1x1x8xf32> to vector<1x8xf32>
    %6 = arith.truncf %1 : vector<4x32xf32> to vector<4x32xbf16>
    %7 = arith.truncf %3 : vector<8x32xf32> to vector<8x32xbf16>
    %c0_8 = arith.constant 0 : index
    %c0_9 = arith.constant 0 : index
    %8 = vector.load %arg6[%c0_8, %c0_9] : memref<32x4xbf16, #tpu.memory_space<vmem>>, vector<32x4xbf16>
    %c0_10 = arith.constant 0 : index
    %c0_11 = arith.constant 0 : index
    %9 = vector.load %arg7[%c0_10, %c0_11] : memref<1x2xf32, #tpu.memory_space<vmem>>, vector<1x2xf32>
    %10 = vector.extract_strided_slice %9 {offsets = [0, 0], sizes = [1, 1], strides = [1, 1]} : vector<1x2xf32> to vector<1x1xf32>
    %11 = vector.extract_strided_slice %9 {offsets = [0, 1], sizes = [1, 1], strides = [1, 1]} : vector<1x2xf32> to vector<1x1xf32>
    %c0_12 = arith.constant 0 : index
    %c0_13 = arith.constant 0 : index
    %12 = vector.load %arg4[%c0_12, %c0_13] : memref<32x32xbf16, #tpu.memory_space<vmem>>, vector<32x32xbf16>
    %cst = arith.constant dense<0.000000e+00> : vector<8x32xf32>
    %13 = tpu.matmul %7, %12, %cst {dimension_numbers = #tpu.dot_dimension_numbers<[1], [0], [0], [1], [0, 0, 1, 1], [], []>} : vector<8x32xbf16>, vector<32x32xbf16>, vector<8x32xf32> -> vector<8x32xf32>
    %c0_14 = arith.constant 0 : index
    %c0_15 = arith.constant 0 : index
    %14 = vector.load %arg5[%c0_14, %c0_15] : memref<1x32xf32, #tpu.memory_space<vmem>>, vector<1x32xf32>
    %15 = vector.broadcast %14 : vector<1x32xf32> to vector<8x32xf32>
    %16 = arith.addf %13, %15 : vector<8x32xf32>
    %cst_16 = arith.constant dense<0.000000e+00> : vector<4x4xf32>
    %17 = tpu.matmul %6, %8, %cst_16 {dimension_numbers = #tpu.dot_dimension_numbers<[1], [0], [0], [1], [0, 0, 1, 1], [], []>} : vector<4x32xbf16>, vector<32x4xbf16>, vector<4x4xf32> -> vector<4x4xf32>
    %cst_17 = arith.constant dense<0.000000e+00> : vector<8x4xf32>
    %18 = tpu.matmul %7, %8, %cst_17 {dimension_numbers = #tpu.dot_dimension_numbers<[1], [0], [0], [1], [0, 0, 1, 1], [], []>} : vector<8x32xbf16>, vector<32x4xbf16>, vector<8x4xf32> -> vector<8x4xf32>
    %19 = vector.extract_strided_slice %17 {offsets = [0, 0], sizes = [4, 1], strides = [1, 1]} : vector<4x4xf32> to vector<4x1xf32>
    %20 = vector.broadcast %10 : vector<1x1xf32> to vector<4x1xf32>
    %21 = arith.addf %19, %20 : vector<4x1xf32>
    %22 = vector.extract_strided_slice %18 {offsets = [0, 1], sizes = [8, 1], strides = [1, 1]} : vector<8x4xf32> to vector<8x1xf32>
    %cst_18 = arith.constant 1.000000e+00 : f32
    %23 = vector.broadcast %cst_18 : f32 to vector<4x1xf32>
    "tpu.trace_start"() <{level = 10 : i32, message = "ck,lk->cl"}> : () -> ()
    %cst_19 = arith.constant dense<0.000000e+00> : vector<4x8xf32>
    %24 = tpu.matmul %23, %22, %cst_19 {dimension_numbers = #tpu.dot_dimension_numbers<[1], [1], [0], [0], [0, 0, 1, 0], [], []>} : vector<4x1xf32>, vector<8x1xf32>, vector<4x8xf32> -> vector<4x8xf32>
    "tpu.trace_stop"() : () -> ()
    %25 = vector.broadcast %21 : vector<4x1xf32> to vector<4x8xf32>
    %26 = arith.addf %25, %24 : vector<4x8xf32>
    %cst_20 = arith.constant 5.000000e-01 : f32
    %27 = vector.broadcast %cst_20 : f32 to vector<1x8xf32>
    %28 = arith.cmpf ogt, %5, %27 : vector<1x8xf32>
    %cst_21 = arith.constant -1.000000e+09 : f32
    %29 = vector.shape_cast %28 : vector<1x8xi1> to vector<1x8xi1>
    %30 = vector.broadcast %29 : vector<1x8xi1> to vector<4x8xi1>
    %31 = vector.broadcast %cst_21 : f32 to vector<4x8xf32>
    %32 = arith.select %30, %26, %31 : vector<4x8xi1>, vector<4x8xf32>
    %cst_22 = arith.constant dense<0xFF800000> : vector<4xf32>
    %33 = vector.multi_reduction <maximumf>, %32, %cst_22 [1] : vector<4x8xf32> to vector<4xf32>
    %34 = vector.shape_cast %33 : vector<4xf32> to vector<4x1xf32>
    %35 = vector.broadcast %34 : vector<4x1xf32> to vector<4x8xf32>
    %36 = arith.subf %32, %35 : vector<4x8xf32>
    %37 = math.exp %36 : vector<4x8xf32>
    %cst_23 = arith.constant dense<0.000000e+00> : vector<4xf32>
    %38 = vector.multi_reduction <add>, %37, %cst_23 [1] : vector<4x8xf32> to vector<4xf32>
    %39 = vector.shape_cast %38 : vector<4xf32> to vector<4x1xf32>
    %40 = tpu.reciprocal %39 {approx = true} : vector<4x1xf32> -> vector<4x1xf32>
    %41 = vector.broadcast %40 : vector<4x1xf32> to vector<4x8xf32>
    %42 = arith.mulf %37, %41 : vector<4x8xf32>
    %43 = arith.truncf %42 : vector<4x8xf32> to vector<4x8xbf16>
    %44 = arith.truncf %16 : vector<8x32xf32> to vector<8x32xbf16>
    %cst_24 = arith.constant dense<0.000000e+00> : vector<4x32xf32>
    %45 = tpu.matmul %43, %44, %cst_24 {dimension_numbers = #tpu.dot_dimension_numbers<[1], [0], [0], [1], [0, 0, 1, 1], [], []>} : vector<4x8xbf16>, vector<8x32xbf16>, vector<4x32xf32> -> vector<4x32xf32>
    %46 = arith.addf %45, %1 : vector<4x32xf32>
    %47 = arith.truncf %46 : vector<4x32xf32> to vector<4x32xbf16>
    %cst_25 = arith.constant dense<0.000000e+00> : vector<4x4xf32>
    %48 = tpu.matmul %47, %8, %cst_25 {dimension_numbers = #tpu.dot_dimension_numbers<[1], [0], [0], [1], [0, 0, 1, 1], [], []>} : vector<4x32xbf16>, vector<32x4xbf16>, vector<4x4xf32> -> vector<4x4xf32>
    %49 = vector.extract_strided_slice %48 {offsets = [0, 2], sizes = [4, 1], strides = [1, 1]} : vector<4x4xf32> to vector<4x1xf32>
    %50 = vector.extract_strided_slice %17 {offsets = [0, 3], sizes = [4, 1], strides = [1, 1]} : vector<4x4xf32> to vector<4x1xf32>
    %51 = arith.addf %49, %50 : vector<4x1xf32>
    %52 = vector.broadcast %11 : vector<1x1xf32> to vector<4x1xf32>
    %53 = arith.addf %51, %52 : vector<4x1xf32>
    %54 = arith.negf %53 : vector<4x1xf32>
    %55 = math.exp %54 : vector<4x1xf32>
    %cst_26 = arith.constant 1.000000e+00 : f32
    %56 = vector.broadcast %cst_26 : f32 to vector<4x1xf32>
    %57 = arith.addf %56, %55 : vector<4x1xf32>
    %58 = arith.divf %56, %57 : vector<4x1xf32>
    %59 = vector.broadcast %58 : vector<4x1xf32> to vector<4x32xf32>
    %60 = arith.mulf %59, %46 : vector<4x32xf32>
    %cst_27 = arith.constant 1.000000e+00 : f32
    %61 = vector.broadcast %cst_27 : f32 to vector<4x1xf32>
    %62 = arith.subf %61, %58 : vector<4x1xf32>
    %63 = vector.broadcast %62 : vector<4x1xf32> to vector<4x32xf32>
    %64 = arith.mulf %63, %1 : vector<4x32xf32>
    %65 = arith.addf %60, %64 : vector<4x32xf32>
    %c0_28 = arith.constant 0 : index
    %c0_29 = arith.constant 0 : index
    %c0_30 = arith.constant 0 : index
    %66 = vector.load %arg8[%c0_28, %c0_29, %c0_30] : memref<1x4x32xf32, #tpu.memory_space<vmem>>, vector<1x4x32xf32>
    %67 = vector.shape_cast %66 : vector<1x4x32xf32> to vector<4x32xf32>
    %68 = vector.shape_cast %65 : vector<4x32xf32> to vector<1x4x32xf32>
    tpu.vector_store %arg8[%c0_28, %c0_29, %c0_30], %68 {strides = array<i32>} : memref<1x4x32xf32, #tpu.memory_space<vmem>>, vector<1x4x32xf32>,
    return
  }
  func.func @transform_0(%arg0: i32) -> (i32, i32, i32) {
    %c0_i32 = arith.constant 0 : i32
    %c0_i32_0 = arith.constant 0 : i32
    %c0_i32_1 = arith.constant 0 : i32
    return %arg0, %c0_i32, %c0_i32_0 : i32, i32, i32
  }
  func.func @transform_1(%arg0: i32) -> (i32, i32, i32) {
    %c0_i32 = arith.constant 0 : i32
    %c0_i32_0 = arith.constant 0 : i32
    %c0_i32_1 = arith.constant 0 : i32
    return %arg0, %c0_i32, %c0_i32_0 : i32, i32, i32
  }
  func.func @transform_2(%arg0: i32) -> (i32, i32, i32) {
    %c0_i32 = arith.constant 0 : i32
    %c0_i32_0 = arith.constant 0 : i32
    %c0_i32_1 = arith.constant 0 : i32
    return %arg0, %c0_i32, %c0_i32_0 : i32, i32, i32
  }
  func.func @transform_3(%arg0: i32) -> (i32, i32) {
    %c0_i32 = arith.constant 0 : i32
    %c0_i32_0 = arith.constant 0 : i32
    %c0_i32_1 = arith.constant 0 : i32
    return %c0_i32, %c0_i32_0 : i32, i32
  }
  func.func @transform_4(%arg0: i32) -> (i32, i32) {
    %c0_i32 = arith.constant 0 : i32
    %c0_i32_0 = arith.constant 0 : i32
    %c0_i32_1 = arith.constant 0 : i32
    return %c0_i32, %c0_i32_0 : i32, i32
  }
  func.func @transform_5(%arg0: i32) -> (i32, i32) {
    %c0_i32 = arith.constant 0 : i32
    %c0_i32_0 = arith.constant 0 : i32
    %c0_i32_1 = arith.constant 0 : i32
    return %c0_i32, %c0_i32_0 : i32, i32
  }
  func.func @transform_6(%arg0: i32) -> (i32, i32) {
    %c0_i32 = arith.constant 0 : i32
    %c0_i32_0 = arith.constant 0 : i32
    %c0_i32_1 = arith.constant 0 : i32
    return %c0_i32, %c0_i32_0 : i32, i32
  }
  func.func @transform_7(%arg0: i32) -> (i32, i32, i32) {
    %c0_i32 = arith.constant 0 : i32
    %c0_i32_0 = arith.constant 0 : i32
    %c0_i32_1 = arith.constant 0 : i32
    return %arg0, %c0_i32, %c0_i32_0 : i32, i32, i32
  }
}

</mosaic_0001>

<llo_original>
// kernel: relation_attention.1
$region0: #{relation_attention.1}
  #allocation0 [shape = 'u32[]', space=smem, size = 0x4, offset = 0x4, fixed_abs, tag = 'smem constant byte address 0x4 - core index']
  #allocation1 [shape = 'u32[144,128]{1,0:T(1,128)}', space=vmem, size = 0x12000, scoped, tag = 'internal scratch']
  %s0 = inlined_call_operand.vmem [shape: f32[2,4,32], index: 0, kind: input, shape index: {}]
  %s1 = inlined_call_operand.vmem [shape: f32[2,8,32], index: 1, kind: input, shape index: {}]
  %s2 = inlined_call_operand.vmem [shape: f32[2,1,8], index: 2, kind: input, shape index: {}]
  %s3 = inlined_call_operand.hbm [shape: bf16[32,32], index: 3, kind: input, shape index: {}]
  %s4 = inlined_call_operand.vmem [shape: f32[1,32], index: 4, kind: input, shape index: {}]
  %s5 = inlined_call_operand.vmem [shape: bf16[32,4], index: 5, kind: input, shape index: {}]
  %s6 = inlined_call_operand.vmem [shape: f32[1,2], index: 6, kind: input, shape index: {}]
  %s7 = inlined_call_operand.hbm [shape: f32[2,4,32], index: 7, kind: output, shape index: {}]
  %s8 = sld [smem:[#allocation0]]
  $region65: #{relation_attention.1} parent=0
    _
  %s10 = ssub.s32 1, %s8
  %s11 = scalar_select 0, %s10, %s8
  $region1: #{relation_attention.1} parent=0
    #allocation2 [shape = 'u8[8192]{0}', space=vmem, size = 0x2000, scoped, tag = 'input window, operand 3, single buffered']
    #allocation3 [shape = 's32[2]{0}', space=sflag, size = 0x8, scoped, tag = 'scoped memory for relation_attention.1']
    #allocation4 [shape = 's32[2]{0}', space=sflag, size = 0x8, scoped, tag = 'scoped memory for relation_attention.1']
    #allocation5 [shape = 'u8[4096]{0}', space=vmem, size = 0x1000, scoped, tag = 'output window, operand 0']
    %12 = vsyncpa [#allocation3], 0
    %13 = vsyncpa [#allocation4], 0
    %s14 = scalar_lea.sflag [#allocation4], 1
    %15 = vsyncpa %s14, 0
    loop: start=0, step=1, limit=4
    $region2: #{relation_attention.1} parent=1 // loop_pre_header
      _
    $region3: #{relation_attention.1} parent=1 // loop_header
      %s17 = sphi 0, %s21
      %p18 = scmp.ge.s32.totalorder %s17, 4
      %s27 = sphi 0, %s29
      %s30 = sphi 0, %s27
      %s31 = sphi 0, %s30
      %s47 = sphi 0, %s31
      %s53 = sphi 0, %s55
      %s56 = sphi 0, %s53
      %s57 = sphi 0, %s56
      %s73 = sphi 0, %s57
      %s79 = sphi 0, %s81
      %s82 = sphi 0, %s79
      %s83 = sphi 0, %s82
      %s99 = sphi 0, %s83
      %s103 = sphi 0, %s103
      %s105 = sphi 0, %s103
      %s106 = sphi 0, %s105
      %s120 = sphi 0, %s106
      %s124 = sphi 0, %s124
      %s126 = sphi 0, %s124
      %s127 = sphi 0, %s126
      %s141 = sphi 0, %s127
      %s145 = sphi 0, %s145
      %s147 = sphi 0, %s145
      %s148 = sphi 0, %s147
      %s162 = sphi 0, %s148
      %s166 = sphi 0, %s166
      %s168 = sphi 0, %s166
      %s169 = sphi 0, %s168
      %s183 = sphi 0, %s169
      %s189 = sphi 0, %s191
      %s192 = sphi 0, %s189
      %s193 = sphi 0, %s192
      %s209 = sphi 0, %s193
    $region4: #{relation_attention.1} parent=1 // loop_header_branch
      %20 = sbr.rel (%p18) target = $region8
    $region5: #{relation_attention.1} parent=1 // loop_body
      %s22 = ssub.s32 %s17, 1
      %s23 = ssub.s32 %s17, 2
      %s24 = sadd.s32 %s17, 1
      %s25 = ssub.s32 %s17, %s24
      %p26 = scmp.eq.s32.totalorder %s25, 0
      %s28 = sadd.s32 %s27, 1
      %s29 = scalar_select %p26, %s27, %s28
      %p32 = pneg %p26
      %p33 = scmp.eq.s32.totalorder %s17, 1
      %p34 = por %p32, %p33
      %p35 = scmp.ne.s32.totalorder %s27, %s30
      %p36 = scmp.eq.s32.totalorder %s17, 0
      %p37 = por %p35, %p36
      %p38 = scmp.ne.s32.totalorder %s27, %s30
      %p39 = scmp.eq.s32.totalorder %s22, 1
      %p40 = por %p38, %p39
      %p41 = scmp.ne.s32.totalorder %s30, %s31
      %p42 = scmp.eq.s32.totalorder %s22, 0
      %p43 = por %p41, %p42
      %p44 = scmp.ne.s32.totalorder %s30, %s31
      %p45 = scmp.eq.s32.totalorder %s23, 1
      %p46 = por %p44, %p45
      %p48 = scmp.ne.s32.totalorder %s31, %s47
      %p49 = scmp.eq.s32.totalorder %s23, 0
      %p50 = por %p48, %p49
      %s51 = ssub.s32 %s17, %s24
      %p52 = scmp.eq.s32.totalorder %s51, 0
      %s54 = sadd.s32 %s53, 1
      %s55 = scalar_select %p52, %s53, %s54
      %p58 = pneg %p52
      %p59 = scmp.eq.s32.totalorder %s17, 1
      %p60 = por %p58, %p59
      %p61 = scmp.ne.s32.totalorder %s53, %s56
      %p62 = scmp.eq.s32.totalorder %s17, 0
      %p63 = por %p61, %p62
      %p64 = scmp.ne.s32.totalorder %s53, %s56
      %p65 = scmp.eq.s32.totalorder %s22, 1
      %p66 = por %p64, %p65
      %p67 = scmp.ne.s32.totalorder %s56, %s57
      %p68 = scmp.eq.s32.totalorder %s22, 0
      %p69 = por %p67, %p68
      %p70 = scmp.ne.s32.totalorder %s56, %s57
      %p71 = scmp.eq.s32.totalorder %s23, 1
      %p72 = por %p70, %p71
      %p74 = scmp.ne.s32.totalorder %s57, %s73
      %p75 = scmp.eq.s32.totalorder %s23, 0
      %p76 = por %p74, %p75
      %s77 = ssub.s32 %s17, %s24
      %p78 = scmp.eq.s32.totalorder %s77, 0
      %s80 = sadd.s32 %s79, 1
      %s81 = scalar_select %p78, %s79, %s80
      %p84 = pneg %p78
      %p85 = scmp.eq.s32.totalorder %s17, 1
      %p86 = por %p84, %p85
      %p87 = scmp.ne.s32.totalorder %s79, %s82
      %p88 = scmp.eq.s32.totalorder %s17, 0
      %p89 = por %p87, %p88
      %p90 = scmp.ne.s32.totalorder %s79, %s82
      %p91 = scmp.eq.s32.totalorder %s22, 1
      %p92 = por %p90, %p91
      %p93 = scmp.ne.s32.totalorder %s82, %s83
      %p94 = scmp.eq.s32.totalorder %s22, 0
      %p95 = por %p93, %p94
      %p96 = scmp.ne.s32.totalorder %s82, %s83
      %p97 = scmp.eq.s32.totalorder %s23, 1
      %p98 = por %p96, %p97
      %p100 = scmp.ne.s32.totalorder %s83, %s99
      %p101 = scmp.eq.s32.totalorder %s23, 0
      %p102 = por %p100, %p101
      %s104 = sadd.s32 %s103, 1
      %p107 = scmp.eq.s32.totalorder %s17, 1
      %p108 = scmp.ne.s32.totalorder %s103, %s105
      %p109 = scmp.eq.s32.totalorder %s17, 0
      %p110 = por %p108, %p109
      %p111 = scmp.ne.s32.totalorder %s103, %s105
      %p112 = scmp.eq.s32.totalorder %s22, 1
      %p113 = por %p111, %p112
      %p114 = scmp.ne.s32.totalorder %s105, %s106
      %p115 = scmp.eq.s32.totalorder %s22, 0
      %p116 = por %p114, %p115
      %p117 = scmp.ne.s32.totalorder %s105, %s106
      %p118 = scmp.eq.s32.totalorder %s23, 1
      %p119 = por %p117, %p118
      %p121 = scmp.ne.s32.totalorder %s106, %s120
      %p122 = scmp.eq.s32.totalorder %s23, 0
      %p123 = por %p121, %p122
      %s125 = sadd.s32 %s124, 1
      %p128 = scmp.eq.s32.totalorder %s17, 1
      %p129 = scmp.ne.s32.totalorder %s124, %s126
      %p130 = scmp.eq.s32.totalorder %s17, 0
      %p131 = por %p129, %p130
      %p132 = scmp.ne.s32.totalorder %s124, %s126
      %p133 = scmp.eq.s32.totalorder %s22, 1
      %p134 = por %p132, %p133
      %p135 = scmp.ne.s32.totalorder %s126, %s127
      %p136 = scmp.eq.s32.totalorder %s22, 0
      %p137 = por %p135, %p136
      %p138 = scmp.ne.s32.totalorder %s126, %s127
      %p139 = scmp.eq.s32.totalorder %s23, 1
      %p140 = por %p138, %p139
      %p142 = scmp.ne.s32.totalorder %s127, %s141
      %p143 = scmp.eq.s32.totalorder %s23, 0
      %p144 = por %p142, %p143
      %s146 = sadd.s32 %s145, 1
      %p149 = scmp.eq.s32.totalorder %s17, 1
      %p150 = scmp.ne.s32.totalorder %s145, %s147
      %p151 = scmp.eq.s32.totalorder %s17, 0
      %p152 = por %p150, %p151
      %p153 = scmp.ne.s32.totalorder %s145, %s147
      %p154 = scmp.eq.s32.totalorder %s22, 1
      %p155 = por %p153, %p154
      %p156 = scmp.ne.s32.totalorder %s147, %s148
      %p157 = scmp.eq.s32.totalorder %s22, 0
      %p158 = por %p156, %p157
      %p159 = scmp.ne.s32.totalorder %s147, %s148
      %p160 = scmp.eq.s32.totalorder %s23, 1
      %p161 = por %p159, %p160
      %p163 = scmp.ne.s32.totalorder %s148, %s162
      %p164 = scmp.eq.s32.totalorder %s23, 0
      %p165 = por %p163, %p164
      %s167 = sadd.s32 %s166, 1
      %p170 = scmp.eq.s32.totalorder %s17, 1
      %p171 = scmp.ne.s32.totalorder %s166, %s168
      %p172 = scmp.eq.s32.totalorder %s17, 0
      %p173 = por %p171, %p172
      %p174 = scmp.ne.s32.totalorder %s166, %s168
      %p175 = scmp.eq.s32.totalorder %s22, 1
      %p176 = por %p174, %p175
      %p177 = scmp.ne.s32.totalorder %s168, %s169
      %p178 = scmp.eq.s32.totalorder %s22, 0
      %p179 = por %p177, %p178
      %p180 = scmp.ne.s32.totalorder %s168, %s169
      %p181 = scmp.eq.s32.totalorder %s23, 1
      %p182 = por %p180, %p181
      %p184 = scmp.ne.s32.totalorder %s169, %s183
      %p185 = scmp.eq.s32.totalorder %s23, 0
      %p186 = por %p184, %p185
      %s187 = ssub.s32 %s17, %s24
      %p188 = scmp.eq.s32.totalorder %s187, 0
      %s190 = sadd.s32 %s189, 1
      %s191 = scalar_select %p188, %s189, %s190
      %p194 = pneg %p188
      %p195 = scmp.eq.s32.totalorder %s17, 1
      %p196 = por %p194, %p195
      %p197 = scmp.ne.s32.totalorder %s189, %s192
      %p198 = scmp.eq.s32.totalorder %s17, 0
      %p199 = por %p197, %p198
      %p200 = scmp.ne.s32.totalorder %s189, %s192
      %p201 = scmp.eq.s32.totalorder %s22, 1
      %p202 = por %p200, %p201
      %p203 = scmp.ne.s32.totalorder %s192, %s193
      %p204 = scmp.eq.s32.totalorder %s22, 0
      %p205 = por %p203, %p204
      %p206 = scmp.ne.s32.totalorder %s192, %s193
      %p207 = scmp.eq.s32.totalorder %s23, 1
      %p208 = por %p206, %p207
      %p210 = scmp.ne.s32.totalorder %s193, %s209
      %p211 = scmp.eq.s32.totalorder %s23, 0
      %p212 = por %p210, %p211
      %p213 = scmp.le.s32.totalorder 1, %s17
      %p214 = scmp.lt.s32.totalorder %s17, 3
      %p215 = pnand %p213, %p214
      %p216 = pneg %p215
      // Predicated region
      $region9: #{relation_attention.1} parent=5 // pred_check
        _
      $region10: #{relation_attention.1} parent=5 // pred_check_branch
        %218 = sbr.rel (%p215) target = $region12
      $region11: #{relation_attention.1} parent=5 // pred_region
        %s219 = ssub.s32 %s17, 1
        // Predicated region
        $region13: #{relation_attention.1} parent=11 // pred_check
          %p220 = pneg %p116
        $region14: #{relation_attention.1} parent=11 // pred_check_branch
          %222 = sbr.rel (%p220) target = $region16
        $region15: #{relation_attention.1} parent=11 // pred_region
          %s224 = ssub.s32 256, 256
          %225 = vsyncadd [#allocation3], %s224
          %s226 = sshll.u32 [#allocation2], 4
          %s227 = int_to_ptr.vmem [resolvable:$true] %s226
          %232 = dma.hbm_to_vmem [thread:$0]  %s3, 256, %s227, [#allocation3], 64, 64, 4
        $region16: #{relation_attention.1} parent=11 // pred_fallthru
          _
        // Predicated region
        $region17: #{relation_attention.1} parent=11 // pred_check
          %p233 = pneg %p137
        $region18: #{relation_attention.1} parent=11 // pred_check_branch
          %235 = sbr.rel (%p233) target = $region20
        $region19: #{relation_attention.1} parent=11 // pred_region
          _
        $region20: #{relation_attention.1} parent=11 // pred_fallthru
          _
        // Predicated region
        $region21: #{relation_attention.1} parent=11 // pred_check
          %p236 = pneg %p158
        $region22: #{relation_attention.1} parent=11 // pred_check_branch
          %238 = sbr.rel (%p236) target = $region24
        $region23: #{relation_attention.1} parent=11 // pred_region
          _
        $region24: #{relation_attention.1} parent=11 // pred_fallthru
          _
        // Predicated region
        $region25: #{relation_attention.1} parent=11 // pred_check
          %p239 = pneg %p179
        $region26: #{relation_attention.1} parent=11 // pred_check_branch
          %241 = sbr.rel (%p239) target = $region28
        $region27: #{relation_attention.1} parent=11 // pred_region
          _
        $region28: #{relation_attention.1} parent=11 // pred_fallthru
          _
      $region12: #{relation_attention.1} parent=5 // pred_fallthru
        _
      %p242 = scmp.lt.s32.totalorder %s17, 2
      // Predicated region
      $region29: #{relation_attention.1} parent=5 // pred_check
        %p243 = pneg %p242
      $region30: #{relation_attention.1} parent=5 // pred_check_branch
        %245 = sbr.rel (%p243) target = $region32
      $region31: #{relation_attention.1} parent=5 // pred_region
        // Predicated region
        $region33: #{relation_attention.1} parent=31 // pred_check
          %p246 = pneg %p37
        $region34: #{relation_attention.1} parent=31 // pred_check_branch
          %248 = sbr.rel (%p246) target = $region36
        $region35: #{relation_attention.1} parent=31 // pred_region
          %p249 = scmp.lt.s32.totalorder %s17, 1
          %s250 = scalar_select %p249, %s17, 1
          %s251 = smul.addr %s250, 4
          %s252 = scalar_lea.vmem %s0, %s251
        $region36: #{relation_attention.1} parent=31 // pred_fallthru
          _
        // Predicated region
        $region37: #{relation_attention.1} parent=31 // pred_check
          %p253 = pneg %p63
        $region38: #{relation_attention.1} parent=31 // pred_check_branch
          %255 = sbr.rel (%p253) target = $region40
        $region39: #{relation_attention.1} parent=31 // pred_region
          %p256 = scmp.lt.s32.totalorder %s17, 1
          %s257 = scalar_select %p256, %s17, 1
          %s258 = smul.addr %s257, 8
          %s259 = scalar_lea.vmem %s1, %s258
        $region40: #{relation_attention.1} parent=31 // pred_fallthru
          _
        // Predicated region
        $region41: #{relation_attention.1} parent=31 // pred_check
          %p260 = pneg %p89
        $region42: #{relation_attention.1} parent=31 // pred_check_branch
          %262 = sbr.rel (%p260) target = $region44
        $region43: #{relation_attention.1} parent=31 // pred_region
          %p263 = scmp.lt.s32.totalorder %s17, 1
          %s264 = scalar_select %p263, %s17, 1
          %s265 = scalar_lea.vmem %s2, %s264
        $region44: #{relation_attention.1} parent=31 // pred_fallthru
          _
      $region32: #{relation_attention.1} parent=5 // pred_fallthru
        _
      %p266 = scmp.le.s32.totalorder 1, %s17
      %p267 = scmp.lt.s32.totalorder %s17, 3
      %p268 = pnand %p266, %p267
      %p269 = pneg %p268
      // Predicated region
      $region45: #{relation_attention.1} parent=5 // pred_check
        _
      $region46: #{relation_attention.1} parent=5 // pred_check_branch
        %271 = sbr.rel (%p268) target = $region48
      $region47: #{relation_attention.1} parent=5 // pred_region
        %s272 = ssub.s32 %s17, 1
        // Predicated region
        $region49: #{relation_attention.1} parent=47 // pred_check
          %p273 = pneg %p116
        $region50: #{relation_attention.1} parent=47 // pred_check_branch
          %275 = sbr.rel (%p273) target = $region52
        $region51: #{relation_attention.1} parent=47 // pred_region
          %276 = dma.done [#allocation3], 256
        $region52: #{relation_attention.1} parent=47 // pred_fallthru
          _
        %p277 = scmp.lt.s32.totalorder %s22, 1
        %s278 = scalar_select %p277, %s22, 1
        %s279 = smul.addr %s278, 4
        %s280 = scalar_lea.vmem %s0, %s279
        %p281 = pneg %p43
        %p282 = pneg %p40
        %p283 = scmp.lt.s32.totalorder %s22, 1
        %s284 = scalar_select %p283, %s22, 1
        %s285 = smul.addr %s284, 8
        %s286 = scalar_lea.vmem %s1, %s285
        %p287 = pneg %p69
        %p288 = pneg %p66
        %p289 = scmp.lt.s32.totalorder %s22, 1
        %s290 = scalar_select %p289, %s22, 1
        %s291 = scalar_lea.vmem %s2, %s290
        %p292 = pneg %p95
        %p293 = pneg %p92
        %p294 = pneg %p116
        %p295 = pneg %p113
        %p296 = pneg %p137
        %p297 = pneg %p134
        %p298 = pneg %p158
        %p299 = pneg %p155
        %p300 = pneg %p179
        %p301 = pneg %p176
        %p302 = pneg %p205
        %p303 = pneg %p202
        %s304 = sand.u32 %s192, 1
        %s305 = scalar_lea.sflag [#allocation4], %s304
        %s306 = sand.u32 %s192, 1
        %s307 = smul.addr %s306, 4
        %s308 = scalar_lea.vmem [#allocation5], %s307
        %p309 = scmp.lt.s32.totalorder %s22, 1
        %s310 = scalar_select %p309, %s22, 1
        %s311 = smul.addr %s310, 4
        %s312 = scalar_lea.vmem %s0, %s311
        %p313 = scmp.lt.s32.totalorder %s22, 1
        %s314 = scalar_select %p313, %s22, 1
        %s315 = smul.addr %s314, 8
        %s316 = scalar_lea.vmem %s1, %s315
        %p317 = scmp.lt.s32.totalorder %s22, 1
        %s318 = scalar_select %p317, %s22, 1
        %s319 = scalar_lea.vmem %s2, %s318
        %v321 = vld [vmem:[%s312] sm:$0xf]
        %v322 = vld [vmem:[%s316] sm:$0xff]
        %v323 = vld [vmem:[%s319] sm:$0x1]
        %v324 = vpack.c.bf16 %v321, %v321
        %v325 = vpack.c.bf16 %v322, %v322
        %v326 = vld [vmem:[%s5] sm:$0xf]
        %v327 = vld [vmem:[%s5 + $0x4] sm:$0xf]
        %v328 = vld [vmem:[%s5 + $0x8] sm:$0xf]
        %v329 = vld [vmem:[%s5 + $0xc] sm:$0xf]
        %v330 = vld [vmem:[%s6] sm:$0x1]
        %v331 = vld [vmem:[#allocation2] sm:$0xf]
        %v332 = vld [vmem:[#allocation2 + $0x4] sm:$0xf]
        %v333 = vld [vmem:[#allocation2 + $0x8] sm:$0xf]
        %v334 = vld [vmem:[#allocation2 + $0xc] sm:$0xf]
        %v335 = vld [vmem:[%s4] sm:$0x1]
        %v337 = vlaneseq
        %v338 = vshrl.u32 %v337, 7
        %v339 = vsub.s32 0, %v338
        %v340 = vrot.slane %v335, %v339
        %v346 = vunpack.c.l.b16 %v331
        %v347 = vunpack.c.l.b16 %v332
        %v348 = vunpack.c.l.b16 %v333
        %v349 = vunpack.c.l.b16 %v334
        %v350 = vpack.c.b16 %v347, %v346
        %v351 = vpack.c.b16 %v349, %v348
        %vm354 = vcmask 261120
        %v356 = vsel %vm354, %v325, 0
        %358 = vmatprep.subr.bf16.mxu0 0
        %359 = vmatpush1.bf16.msra.mxu0 0
        %360 = vmatprep.subr.bf16.mxu0 0
        %361 = vmatpush1.bf16.msra.mxu0 0
        %362 = vmatprep.subr.bf16.mxu0 0
        %363 = vmatpush1.bf16.msra.mxu0 0
        %364 = vmatprep.subr.bf16.mxu0 0
        %365 = vmatpush1.bf16.msra.mxu0 0
        %366 = vmatprep.subr.bf16.mxu0 0
        %367 = vmatpush1.bf16.msra.mxu0 0
        %368 = vmatprep.subr.bf16.mxu0 0
        %369 = vmatpush1.bf16.msra.mxu0 0
        %370 = vmatprep.subr.bf16.mxu0 0
        %371 = vmatpush1.bf16.msra.mxu0 %v351
        %372 = vmatprep.subr.bf16.mxu0 0
        %373 = vmatpush1.bf16.msra.mxu0 %v350
        %374 = vmatprep.subr.bf16.mxu0 0
        %375 = vmatpush2.bf16.msra.mxu0 0
        %376 = vmatprep.subr.bf16.mxu0 0
        %377 = vmatpush2.bf16.msra.mxu0 0
        %378 = vmatprep.subr.bf16.mxu0 0
        %379 = vmatpush2.bf16.msra.mxu0 0
        %380 = vmatprep.subr.bf16.mxu0 0
        %381 = vmatpush2.bf16.msra.mxu0 0
        %382 = vmatprep.subr.bf16.mxu0 0
        %383 = vmatpush2.bf16.msra.mxu0 0
        %384 = vmatprep.subr.bf16.mxu0 0
        %385 = vmatpush2.bf16.msra.mxu0 0
        %386 = vmatprep.subr.bf16.mxu0 0
        %387 = vmatpush2.bf16.msra.mxu0 0
        %388 = vmatprep.subr.bf16.mxu0 0
        %389 = vmatpush2.bf16.msra.mxu0 0
        %390 = vmatprep.mubr.bf16.mxu0 0
        %391 = vmatmul.mubr.bf16.gmra.mxu0 %v356
        %v392 = vpop.f32.mrf.mxu0
        %v393 = vadd.f32 %v340, %v392
        %v394 = vpop.f32.mrf.mxu0
        %v395 = vpop.f32.mrf.mxu0
        %v396 = vpop.f32.mrf.mxu0
        %397 = vdwg.mxu0
        %v402 = vunpack.c.l.b16 %v326
        %v403 = vunpack.c.l.b16 %v327
        %v404 = vunpack.c.l.b16 %v328
        %v405 = vunpack.c.l.b16 %v329
        %v406 = vpack.c.b16 %v403, %v402
        %v407 = vpack.c.b16 %v405, %v404
        %v411 = vsel %vm354, %v324, 0
        %413 = vmatprep.subr.bf16.mxu0 0
        %414 = vmatpush1.bf16.msra.mxu0 0
        %415 = vmatprep.subr.bf16.mxu0 0
        %416 = vmatpush1.bf16.msra.mxu0 0
        %417 = vmatprep.subr.bf16.mxu0 0
        %418 = vmatpush1.bf16.msra.mxu0 0
        %419 = vmatprep.subr.bf16.mxu0 0
        %420 = vmatpush1.bf16.msra.mxu0 0
        %421 = vmatprep.subr.bf16.mxu0 0
        %422 = vmatpush1.bf16.msra.mxu0 0
        %423 = vmatprep.subr.bf16.mxu0 0
        %424 = vmatpush1.bf16.msra.mxu0 0
        %425 = vmatprep.subr.bf16.mxu0 0
        %426 = vmatpush1.bf16.msra.mxu0 %v407
        %427 = vmatprep.subr.bf16.mxu0 0
        %428 = vmatpush1.bf16.msra.mxu0 %v406
        %429 = vmatprep.subr.bf16.mxu0 0
        %430 = vmatpush2.bf16.msra.mxu0 0
        %431 = vmatprep.subr.bf16.mxu0 0
        %432 = vmatpush2.bf16.msra.mxu0 0
        %433 = vmatprep.subr.bf16.mxu0 0
        %434 = vmatpush2.bf16.msra.mxu0 0
        %435 = vmatprep.subr.bf16.mxu0 0
        %436 = vmatpush2.bf16.msra.mxu0 0
        %437 = vmatprep.subr.bf16.mxu0 0
        %438 = vmatpush2.bf16.msra.mxu0 0
        %439 = vmatprep.subr.bf16.mxu0 0
        %440 = vmatpush2.bf16.msra.mxu0 0
        %441 = vmatprep.subr.bf16.mxu0 0
        %442 = vmatpush2.bf16.msra.mxu0 0
        %443 = vmatprep.subr.bf16.mxu0 0
        %444 = vmatpush2.bf16.msra.mxu0 0
        %445 = vmatprep.mubr.bf16.mxu0 0
        %446 = vmatmul.mubr.bf16.gmra.mxu0 %v411
        %v447 = vpop.f32.mrf.mxu0
        %v448 = vadd.f32 0.0, %v447
        %v449 = vpop.f32.mrf.mxu0
        %v450 = vpop.f32.mrf.mxu0
        %v451 = vpop.f32.mrf.mxu0
        %452 = vdwg.mxu0
        %453 = vmatprep.subr.bf16.mxu0 0
        %454 = vmatpush1.bf16.msra.mxu0 0
        %455 = vmatprep.subr.bf16.mxu0 0
        %456 = vmatpush1.bf16.msra.mxu0 0
        %457 = vmatprep.subr.bf16.mxu0 0
        %458 = vmatpush1.bf16.msra.mxu0 0
        %459 = vmatprep.subr.bf16.mxu0 0
        %460 = vmatpush1.bf16.msra.mxu0 0
        %461 = vmatprep.subr.bf16.mxu0 0
        %462 = vmatpush1.bf16.msra.mxu0 0
        %463 = vmatprep.subr.bf16.mxu0 0
        %464 = vmatpush1.bf16.msra.mxu0 0
        %465 = vmatprep.subr.bf16.mxu0 0
        %466 = vmatpush1.bf16.msra.mxu0 %v407
        %467 = vmatprep.subr.bf16.mxu0 0
        %468 = vmatpush1.bf16.msra.mxu0 %v406
        %469 = vmatprep.subr.bf16.mxu0 0
        %470 = vmatpush2.bf16.msra.mxu0 0
        %471 = vmatprep.subr.bf16.mxu0 0
        %472 = vmatpush2.bf16.msra.mxu0 0
        %473 = vmatprep.subr.bf16.mxu0 0
        %474 = vmatpush2.bf16.msra.mxu0 0
        %475 = vmatprep.subr.bf16.mxu0 0
        %476 = vmatpush2.bf16.msra.mxu0 0
        %477 = vmatprep.subr.bf16.mxu0 0
        %478 = vmatpush2.bf16.msra.mxu0 0
        %479 = vmatprep.subr.bf16.mxu0 0
        %480 = vmatpush2.bf16.msra.mxu0 0
        %481 = vmatprep.subr.bf16.mxu0 0
        %482 = vmatpush2.bf16.msra.mxu0 0
        %483 = vmatprep.subr.bf16.mxu0 0
        %484 = vmatpush2.bf16.msra.mxu0 0
        %485 = vmatprep.mubr.bf16.mxu0 0
        %486 = vmatmul.mubr.bf16.gmra.mxu0 %v356
        %v487 = vpop.f32.mrf.mxu0
        %v488 = vadd.f32 0.0, %v487
        %v489 = vpop.f32.mrf.mxu0
        %v490 = vpop.f32.mrf.mxu0
        %v491 = vpop.f32.mrf.mxu0
        %492 = vdwg.mxu0
        %v494 = vlaneseq
        %v495 = vshrl.u32 %v494, 7
        %v496 = vsub.s32 0, %v495
        %v497 = vrot.slane %v330, %v496
        %v499 = vadd.f32 %v448, %v497
        %501 = vrot.lane.b32.xlu0 %v488, 127
        %v502 = vpop.permute.xlu0 %501
        %vm503 = vcmask 7168
        %v505 = vsel %vm503, 1.0, 0
        %v507 = vsel %vm503, %v502, 0
        %509 = vmatprep.subr.mxu0 0.0
        %510 = vmatpush1.xpose.msra.mxu0 0.0
        %511 = vmatprep.subr.mxu0 0.0
        %512 = vmatpush1.xpose.msra.mxu0 0.0
        %513 = vmatprep.subr.mxu0 0.0
        %514 = vmatpush1.xpose.msra.mxu0 0.0
        %515 = vmatprep.subr.mxu0 0.0
        %516 = vmatpush1.xpose.msra.mxu0 0.0
        %517 = vmatprep.subr.mxu0 0.0
        %518 = vmatpush1.xpose.msra.mxu0 0.0
        %519 = vmatprep.subr.mxu0 0.0
        %520 = vmatpush1.xpose.msra.mxu0 0.0
        %521 = vmatprep.subr.mxu0 0.0
        %522 = vmatpush1.xpose.msra.mxu0 0.0
        %523 = vmatprep.subr.mxu0 0.0
        %524 = vmatpush1.xpose.msra.mxu0 0.0
        %525 = vmatprep.subr.mxu0 0.0
        %526 = vmatpush1.xpose.msra.mxu0 0.0
        %527 = vmatprep.subr.mxu0 0.0
        %528 = vmatpush1.xpose.msra.mxu0 0.0
        %529 = vmatprep.subr.mxu0 0.0
        %530 = vmatpush1.xpose.msra.mxu0 0.0
        %531 = vmatprep.subr.mxu0 0.0
        %532 = vmatpush1.xpose.msra.mxu0 0.0
        %533 = vmatprep.subr.mxu0 0.0
        %534 = vmatpush1.xpose.msra.mxu0 0.0
        %535 = vmatprep.subr.mxu0 0.0
        %536 = vmatpush1.xpose.msra.mxu0 0.0
        %537 = vmatprep.subr.mxu0 0.0
        %538 = vmatpush1.xpose.msra.mxu0 0.0
        %539 = vmatprep.subr.mxu0 0.0
        %540 = vmatpush1.xpose.msra.mxu0 %v507
        %541 = vmatprep.subr.mxu0 0.0
        %542 = vmatpush2.xpose.msra.mxu0 0.0
        %543 = vmatprep.subr.mxu0 0.0
        %544 = vmatpush2.xpose.msra.mxu0 0.0
        %545 = vmatprep.subr.mxu0 0.0
        %546 = vmatpush2.xpose.msra.mxu0 0.0
        %547 = vmatprep.subr.mxu0 0.0
        %548 = vmatpush2.xpose.msra.mxu0 0.0
        %549 = vmatprep.subr.mxu0 0.0
        %550 = vmatpush2.xpose.msra.mxu0 0.0
        %551 = vmatprep.subr.mxu0 0.0
        %552 = vmatpush2.xpose.msra.mxu0 0.0
        %553 = vmatprep.subr.mxu0 0.0
        %554 = vmatpush2.xpose.msra.mxu0 0.0
        %555 = vmatprep.subr.mxu0 0.0
        %556 = vmatpush2.xpose.msra.mxu0 0.0
        %557 = vmatprep.subr.mxu0 0.0
        %558 = vmatpush2.xpose.msra.mxu0 0.0
        %559 = vmatprep.subr.mxu0 0.0
        %560 = vmatpush2.xpose.msra.mxu0 0.0
        %561 = vmatprep.subr.mxu0 0.0
        %562 = vmatpush2.xpose.msra.mxu0 0.0
        %563 = vmatprep.subr.mxu0 0.0
        %564 = vmatpush2.xpose.msra.mxu0 0.0
        %565 = vmatprep.subr.mxu0 0.0
        %566 = vmatpush2.xpose.msra.mxu0 0.0
        %567 = vmatprep.subr.mxu0 0.0
        %568 = vmatpush2.xpose.msra.mxu0 0.0
        %569 = vmatprep.subr.mxu0 0.0
        %570 = vmatpush2.xpose.msra.mxu0 0.0
        %571 = vmatprep.subr.mxu0 0.0
        %572 = vmatpush2.xpose.msra.mxu0 0.0
        %573 = vmatprep.mubr.f32.mxu0 0.0
        %574 = vmatmul.mubr.f32.gmra.mxu0 %v505
        %v575 = vpop.f32.mrf.mxu0
        %v576 = vadd.f32 0.0, %v575
        %v577 = vpop.f32.mrf.mxu0
        %578 = vdwg.mxu0
        %580 = vset.pattern.permute.xlu0 0
        %581 = vperm.xlu0 %580, %v499
        %v582 = vpop.permute.xlu0 %581
        %v584 = vadd.f32 %v582, %v576
        %vm585 = vcmp.gt.f32.partialorder %v323, 0.5
        %v586 = vsel %vm585, 1, 0
        %v587 = vlaneseq
        %v588 = vshrl.u32 %v587, 7
        %v589 = vsub.s32 0, %v588
        %v590 = vrot.slane %v586, %v589
        %vm591 = vcmp.eq.s32.totalorder %v590, 1
        %v592 = vsel %vm591, %v584, -1e+09
        %vm593 = vcmask 60416
        %v594 = vsel %vm593, %v592, -inf
        %595 = vmax.xlane.f32.xlu0 %v594
        %v596 = vpop.xlane.xlu0 %595
        %v597 = vsub.f32 %v592, %v596
        %v598 = vmul.f32 %v597, 1.442695
        %v599 = vpow.pop %v598
        %v600 = vsel %vm593, %v599, 0.0
        %601 = vadd.xlane.f32.xlu0 %v600
        %v602 = vpop.xlane.xlu0 %601
        %v603 = vrcp.pop %v602
        %v604 = vmul.f32 %v599, %v603
        %v605 = vpack.c.bf16 %v604, %v604
        %v606 = vpack.c.bf16 %v393, %v393
        %vm607 = vcmask 64512
        %v609 = vsel %vm607, %v605, 0
        %vm611 = vcmask 1043456
        %v613 = vsel %vm611, %v606, 0
        %615 = vmatprep.subr.bf16.mxu0 0
        %616 = vmatpush1.bf16.msra.mxu0 0
        %617 = vmatprep.subr.bf16.mxu0 0
        %618 = vmatpush1.bf16.msra.mxu0 0
        %619 = vmatprep.subr.bf16.mxu0 0
        %620 = vmatpush1.bf16.msra.mxu0 0
        %621 = vmatprep.subr.bf16.mxu0 0
        %622 = vmatpush1.bf16.msra.mxu0 0
        %623 = vmatprep.subr.bf16.mxu0 0
        %624 = vmatpush1.bf16.msra.mxu0 0
        %625 = vmatprep.subr.bf16.mxu0 0
        %626 = vmatpush1.bf16.msra.mxu0 0
        %627 = vmatprep.subr.bf16.mxu0 0
        %628 = vmatpush1.bf16.msra.mxu0 0
        %629 = vmatprep.subr.bf16.mxu0 0
        %630 = vmatpush1.bf16.msra.mxu0 %v613
        %631 = vmatprep.subr.bf16.mxu0 0
        %632 = vmatpush2.bf16.msra.mxu0 0
        %633 = vmatprep.subr.bf16.mxu0 0
        %634 = vmatpush2.bf16.msra.mxu0 0
        %635 = vmatprep.subr.bf16.mxu0 0
        %636 = vmatpush2.bf16.msra.mxu0 0
        %637 = vmatprep.subr.bf16.mxu0 0
        %638 = vmatpush2.bf16.msra.mxu0 0
        %639 = vmatprep.subr.bf16.mxu0 0
        %640 = vmatpush2.bf16.msra.mxu0 0
        %641 = vmatprep.subr.bf16.mxu0 0
        %642 = vmatpush2.bf16.msra.mxu0 0
        %643 = vmatprep.subr.bf16.mxu0 0
        %644 = vmatpush2.bf16.msra.mxu0 0
        %645 = vmatprep.subr.bf16.mxu0 0
        %646 = vmatpush2.bf16.msra.mxu0 0
        %647 = vmatprep.mubr.bf16.mxu0 0
        %648 = vmatmul.mubr.bf16.gmra.mxu0 %v609
        %v649 = vpop.f32.mrf.mxu0
        %v650 = vadd.f32 %v321, %v649
        %v651 = vpop.f32.mrf.mxu0
        %v652 = vpop.f32.mrf.mxu0
        %v653 = vpop.f32.mrf.mxu0
        %654 = vdwg.mxu0
        %v655 = vpack.c.bf16 %v650, %v650
        %v657 = vsel %vm354, %v655, 0
        %659 = vmatprep.subr.bf16.mxu0 0
        %660 = vmatpush1.bf16.msra.mxu0 0
        %661 = vmatprep.subr.bf16.mxu0 0
        %662 = vmatpush1.bf16.msra.mxu0 0
        %663 = vmatprep.subr.bf16.mxu0 0
        %664 = vmatpush1.bf16.msra.mxu0 0
        %665 = vmatprep.subr.bf16.mxu0 0
        %666 = vmatpush1.bf16.msra.mxu0 0
        %667 = vmatprep.subr.bf16.mxu0 0
        %668 = vmatpush1.bf16.msra.mxu0 0
        %669 = vmatprep.subr.bf16.mxu0 0
        %670 = vmatpush1.bf16.msra.mxu0 0
        %671 = vmatprep.subr.bf16.mxu0 0
        %672 = vmatpush1.bf16.msra.mxu0 %v407
        %673 = vmatprep.subr.bf16.mxu0 0
        %674 = vmatpush1.bf16.msra.mxu0 %v406
        %675 = vmatprep.subr.bf16.mxu0 0
        %676 = vmatpush2.bf16.msra.mxu0 0
        %677 = vmatprep.subr.bf16.mxu0 0
        %678 = vmatpush2.bf16.msra.mxu0 0
        %679 = vmatprep.subr.bf16.mxu0 0
        %680 = vmatpush2.bf16.msra.mxu0 0
        %681 = vmatprep.subr.bf16.mxu0 0
        %682 = vmatpush2.bf16.msra.mxu0 0
        %683 = vmatprep.subr.bf16.mxu0 0
        %684 = vmatpush2.bf16.msra.mxu0 0
        %685 = vmatprep.subr.bf16.mxu0 0
        %686 = vmatpush2.bf16.msra.mxu0 0
        %687 = vmatprep.subr.bf16.mxu0 0
        %688 = vmatpush2.bf16.msra.mxu0 0
        %689 = vmatprep.subr.bf16.mxu0 0
        %690 = vmatpush2.bf16.msra.mxu0 0
        %691 = vmatprep.mubr.bf16.mxu0 0
        %692 = vmatmul.mubr.bf16.gmra.mxu0 %v657
        %v693 = vpop.f32.mrf.mxu0
        %v694 = vadd.f32 0.0, %v693
        %v695 = vpop.f32.mrf.mxu0
        %v696 = vpop.f32.mrf.mxu0
        %v697 = vpop.f32.mrf.mxu0
        %698 = vdwg.mxu0
        %700 = vrot.lane.b32.xlu0 %v448, 127
        %v701 = vpop.permute.xlu0 %700
        %v703 = vadd.f32 %v694, %v701
        %704 = vrot.lane.b32.xlu0 %v497, 1
        %v705 = vpop.permute.xlu0 %704
        %v707 = vadd.f32 %v703, %v705
        %v708 = vxor.u32 %v707, 2147483648
        %v709 = vmul.f32 %v708, 1.442695
        %v710 = vpow.pop %v709
        %v711 = vadd.f32 %v710, 1.0
        %v712 = vrcp.pop %v711
        %v713 = vmul.f32 1.0, %v712
        %715 = vset.pattern.permute.xlu0 2
        %716 = vperm.xlu0 %715, %v713
        %v717 = vpop.permute.xlu0 %716
        %v719 = vmul.f32 %v717, %v650
        %v720 = vsub.f32 1.0, %v713
        %722 = vset.pattern.permute.xlu0 2
        %723 = vperm.xlu0 %722, %v720
        %v724 = vpop.permute.xlu0 %723
        %v726 = vmul.f32 %v724, %v321
        %v727 = vadd.f32 %v719, %v726
        %vm728 = vcmask 257024
        %729 = vst.msk [vmem:[%s308] sm:$0xf] %vm728, %v727
        %s730 = sand.u32 %s192, 1
        %s731 = scalar_lea.sflag [#allocation4], %s730
        %s732 = sand.u32 %s192, 1
        %s733 = smul.addr %s732, 4
        %s734 = scalar_lea.vmem [#allocation5], %s733
        // Predicated region
        $region53: #{relation_attention.1} parent=47 // pred_check
          %p735 = pneg %p202
        $region54: #{relation_attention.1} parent=47 // pred_check_branch
          %737 = sbr.rel (%p735) target = $region56
        $region55: #{relation_attention.1} parent=47 // pred_region
          %s739 = ssub.s32 64, 64
          %740 = vsyncadd %s731, %s739
          %s741 = smul.addr %s22, 64
          %s742 = scalar_lea.hbm %s7, %s741
          %s744 = sshll.u32 %s734, 4
          %s745 = int_to_ptr.vmem [resolvable:$true] %s744
          %747 = dma.vmem_to_hbm [thread:$0]  %s745, 64, %s742, %s731
        $region56: #{relation_attention.1} parent=47 // pred_fallthru
          _
      $region48: #{relation_attention.1} parent=5 // pred_fallthru
        _
      %p748 = scmp.le.s32.totalorder 2, %s17
      // Predicated region
      $region57: #{relation_attention.1} parent=5 // pred_check
        %p749 = pneg %p748
      $region58: #{relation_attention.1} parent=5 // pred_check_branch
        %751 = sbr.rel (%p749) target = $region60
      $region59: #{relation_attention.1} parent=5 // pred_region
        %s752 = ssub.s32 %s17, 2
        // Predicated region
        $region61: #{relation_attention.1} parent=59 // pred_check
          %p753 = pneg %p208
        $region62: #{relation_attention.1} parent=59 // pred_check_branch
          %755 = sbr.rel (%p753) target = $region64
        $region63: #{relation_attention.1} parent=59 // pred_region
          %s756 = sand.u32 %s193, 1
          %s757 = scalar_lea.sflag [#allocation4], %s756
          %s758 = sand.u32 %s193, 1
          %s759 = smul.addr %s758, 4
          %s760 = scalar_lea.vmem [#allocation5], %s759
          %761 = dma.done %s757, 64
        $region64: #{relation_attention.1} parent=59 // pred_fallthru
          _
      $region60: #{relation_attention.1} parent=5 // pred_fallthru
        _
    $region6: #{relation_attention.1} parent=1 // loop_footer
      %s21 = sadd.s32 1, %s17
    $region7: #{relation_attention.1} parent=1 // loop_footer_branch
      %16 = sbr.rel target = $region3
    $region8: #{relation_attention.1} parent=1 // loop_exit
      _
    %762 = vsyncpa [#allocation3], 1
    %s763 = scalar_lea.sflag [#allocation3], 1
    %764 = vsyncpa %s763, 1
    %765 = vsyncpa [#allocation4], 1
    %s766 = scalar_lea.sflag [#allocation4], 1
    %767 = vsyncpa %s766, 1

</llo_original>
